<compile_context>
chip_gen: v6e
topology: v6e:2x2x1
jax: 0.10.0
libtpu: 0.0.40
codegen_flags: <defaults>
</compile_context>

<pallas_src>
import jax
import jax.numpy as jnp
import numpy as np
from jax.experimental import pallas as pl
from jax.experimental.pallas import tpu as pltpu

LN_EPS = 1e-5                          # torch.nn.LayerNorm default eps


def _round_up(v, m):
    return (v + m - 1) // m * m


def _chip_vmem_bytes():
    """Per-TensorCore VMEM capacity; conservative fallback if unqueryable."""
    try:
        info = pltpu.get_tpu_info()
        for name in ("vmem_capacity_bytes", "vmem_bytes", "vmem_size_bytes"):
            v = getattr(info, name, None)
            if v:
                return int(v)
    except Exception:
        pass
    return 64 * 1024 * 1024            # v7x-sized fallback (safe everywhere)


_BUFFERED1_OK = None


def _single_buffer_supported():
    """One-time probe: does this jax version lower pipeline_mode=pl.Buffered(1)?

    A try/except around the real pallas_call would not catch the compile-time
    rejection when the wrapper runs under jax.jit, so we probe a tiny kernel's
    lowering once and cache the answer.
    """
    global _BUFFERED1_OK
    if _BUFFERED1_OK is None:
        try:
            def _k(x_ref, o_ref):
                o_ref[...] = x_ref[...] + 1.0

            probe = pl.pallas_call(
                _k,
                out_shape=jax.ShapeDtypeStruct((8, 128), jnp.float32),
                grid=(2,),
                in_specs=[pl.BlockSpec((8, 128), lambda i: (0, 0),
                                       pipeline_mode=pl.Buffered(1))],
                out_specs=pl.BlockSpec((8, 128), lambda i: (0, 0)),
            )
            jax.jit(probe).lower(jax.ShapeDtypeStruct((8, 128), jnp.float32))
            _BUFFERED1_OK = True
        except Exception:
            _BUFFERED1_OK = False
    return _BUFFERED1_OK


def _make_kernel(col_tiled, n_col_tiles, tn, d_model):
    """LayerNorm-core -> x_hat @ W_eff + b_eff -> + residual (original x)."""
    if not col_tiled:
        def kernel(x_ref, w_ref, b_ref, o_ref):
            xf = x_ref[...].astype(jnp.float32)            # LN math stays f32
            mean = jnp.mean(xf, axis=-1, keepdims=True)
            cen = xf - mean
            var = jnp.mean(cen * cen, axis=-1, keepdims=True)
            x_hat = cen * jax.lax.rsqrt(var + LN_EPS)
            z = jnp.dot(x_hat.astype(w_ref.dtype), w_ref[...],
                        preferred_element_type=jnp.float32)
            o_ref[...] = (z + b_ref[...] + xf).astype(o_ref.dtype)
        return kernel

    def kernel(x_ref, w_ref, b_ref, o_ref, xhat_ref, res_ref):
        j = pl.program_id(1)

        # LayerNorm once per row tile; reused across every weight column tile.
        @pl.when(j == 0)
        def _():
            xr = x_ref[...]
            xf = xr.astype(jnp.float32)
            mean = jnp.mean(xf, axis=-1, keepdims=True)
            cen = xf - mean
            var = jnp.mean(cen * cen, axis=-1, keepdims=True)
            xhat_ref[...] = (cen * jax.lax.rsqrt(var + LN_EPS)).astype(xhat_ref.dtype)
            # Stash the residual (original x) column blocks so later column
            # steps need neither a second HBM read of x nor a dynamic lane slice.
            for jj in range(n_col_tiles):
                lo = jj * tn
                hi = min(lo + tn, d_model)
                blk = xr[:, lo:hi]
                if hi - lo < tn:           # padded-output-column fallback only
                    blk = jnp.concatenate(
                        [blk, jnp.zeros((blk.shape[0], tn - (hi - lo)), blk.dtype)],
                        axis=-1)
                res_ref[jj] = blk

        z = jnp.dot(xhat_ref[...], w_ref[...], preferred_element_type=jnp.float32)
        res = res_ref[j].astype(jnp.float32)
        o_ref[...] = (z + b_ref[...] + res).astype(o_ref.dtype)

    return kernel


def prenorm_residual(x, gamma, beta, w, b, *, compute_dtype=None, fast_matmul=False,
                     row_tile=None, col_tile=None):
    """PreNormResidual with fn = Linear(dim, dim).

    x: (..., D).  gamma/beta: (D,) LayerNorm affine.  w: (D, D) PyTorch Linear
    weight (out, in).  b: (D,).  Returns an array shaped/dtyped like x.
    """
    orig_shape = x.shape
    D = orig_shape[-1]
    x2 = x.reshape(-1, D)
    N = x2.shape[0]

    if compute_dtype is None:
        if x.dtype in (jnp.bfloat16, jnp.float16):
            compute_dtype = x.dtype
        elif fast_matmul:
            compute_dtype = jnp.bfloat16      # MXU operands only; LN/residual stay f32
        else:
            compute_dtype = jnp.float32

    # One-time parameter folding (constant folding of parameters, not a per-call
    # rescale):  (x_hat*g + be) @ W.T + b  ==  x_hat @ (g[:,None]*W.T) + (be@W.T + b)
    gamma_f = gamma.astype(jnp.float32)
    beta_f = beta.astype(jnp.float32)
    w_t = w.astype(jnp.float32).T                            # (D_in, D_out)
    w_eff = (gamma_f[:, None] * w_t).astype(compute_dtype)   # cast ONCE, outside kernel
    b_eff = (beta_f @ w_t + b.astype(jnp.float32)).reshape(1, D)   # stays f32

    x_bytes = x.dtype.itemsize
    w_bytes = np.dtype(compute_dtype).itemsize

    chip_vmem = _chip_vmem_bytes()
    vmem_target = min(int(chip_vmem * 0.62), 80 << 20)       # per-step working set
    w_resident_max = min(16 << 20, chip_vmem // 4)

    # ---- output-column tile: keep the full weight resident when it fits ------
    d_out = D
    col_pad = False
    if col_tile is not None:
        tn = max(128, _round_up(int(col_tile), 128))
        if tn >= D:
            tn = D
        elif D % tn != 0:
            col_pad = True
            d_out = _round_up(D, tn)
    elif D * D * w_bytes <= w_resident_max:
        tn = D
    else:
        stream_budget = min(20 << 20, chip_vmem // 3)         # double-buffered weight tile
        tn_cap = max(128, (stream_budget // (2 * D * w_bytes)) // 128 * 128)
        tn = 0
        t = 128
        while t <= min(tn_cap, D):
            if D % t == 0:
                tn = t
            t += 128
        if tn == 0:
            # No 128-multiple divisor of D fits: pad the OUTPUT columns instead of
            # blowing past the VMEM budget with a fully-resident weight.
            tn = min(tn_cap, _round_up(D, 128))
            col_pad = True
            d_out = _round_up(D, tn)

    n_col_tiles = pl.cdiv(d_out, tn)
    if n_col_tiles == 1:                       # single tile => treat as resident
        tn, d_out, col_pad = D, D, False
    col_tiled = n_col_tiles > 1

    if col_pad:
        w_eff = jnp.pad(w_eff, ((0, 0), (0, d_out - D)))
        b_eff = jnp.pad(b_eff, ((0, 0), (0, d_out - D)))

    if col_tiled:
        single_buf_params = False              # weight block changes with j: double-buffer
        w_bufs = 2
    else:
        single_buf_params = _single_buffer_supported()
        w_bufs = 1 if single_buf_params else 2

    # ---- row tile: MXU/bandwidth-filling, shrunk to the chip's VMEM budget ----
    def _est(tm_):
        est = 2 * tm_ * D * x_bytes            # x rows, double-buffered
        est += 2 * tm_ * tn * x_bytes          # output tile, double-buffered
        est += w_bufs * D * tn * w_bytes       # folded weight tile(s)
        est += 2 * tn * 4                      # folded bias
        if col_tiled:
            est += tm_ * D * w_bytes                    # x_hat cache
            est += n_col_tiles * tm_ * tn * x_bytes     # residual column cache
        est += (3 * tm_ * D * 4) // 2          # transient f32 LN intermediates
        return est

    if row_tile is not None:
        tm = max(8, _round_up(int(row_tile), 8))
    else:
        tm = min(512, _round_up(N, 16))
        while tm > 16 and _est(tm) > vmem_target:
            tm = (tm - 128) if tm > 128 else max(16, _round_up(tm // 2, 16))
        if N >= 256 and pl.cdiv(N, tm) < 2:
            tm = _round_up(pl.cdiv(N, 2), 16)  # give both TensorCores a row tile

    n_row_tiles = pl.cdiv(N, tm)               # ragged last block; no jnp.pad copy of x

    cap = max(16 << 20, int(chip_vmem * 0.9))
    vmem_limit = int(min(cap, max(min(32 << 20, cap),
                                  int(_est(tm) * 1.3) + (2 << 20))))

    kernel = _make_kernel(col_tiled, n_col_tiles, tn, D)

    def _param_spec(shape, index_map):
        if single_buf_params:                  # grid-invariant: single buffer saves VMEM
            return pl.BlockSpec(shape, index_map, pipeline_mode=pl.Buffered(1))
        return pl.BlockSpec(shape, index_map)

    in_specs = [
        pl.BlockSpec((tm, D), lambda i, j: (i, 0)),      # full-width rows (LN + matmul K)
        _param_spec((D, tn), lambda i, j: (0, j)),       # folded weight (column tile)
        _param_spec((1, tn), lambda i, j: (0, j)),       # folded bias
    ]
    scratch_shapes = []
    if col_tiled:
        scratch_shapes = [
            pltpu.VMEM((tm, D), compute_dtype),                  # x_hat cache
            pltpu.VMEM((n_col_tiles, tm, tn), x2.dtype),         # residual column cache
        ]

    out2 = pl.pallas_call(
        kernel,
        out_shape=jax.ShapeDtypeStruct((N, d_out), x.dtype),
        grid=(n_row_tiles, n_col_tiles),
        in_specs=in_specs,
        out_specs=pl.BlockSpec((tm, tn), lambda i, j: (i, j)),
        scratch_shapes=scratch_shapes,
        compiler_params=pltpu.CompilerParams(
            # rows parallel (megacore), columns arbitrary (keeps the per-core
            # x_hat / residual caches valid across the inner sweep).
            dimension_semantics=("parallel", "arbitrary"),
            vmem_limit_bytes=vmem_limit),
    )(x2, w_eff, b_eff)

    if d_out != D:
        # TODO(synk): extra slice copy only in the rare padded-column fallback.
        out2 = out2[:, :D]
    return out2.reshape(orig_shape)


def reference(x, gamma, beta, w, b):
    """Pure-JAX PreNormResidual (fn = Linear) in f32: fn(LayerNorm(x)) + x."""
    xf = x.astype(jnp.float32)
    mean = jnp.mean(xf, axis=-1, keepdims=True)
    var = jnp.mean((xf - mean) ** 2, axis=-1, keepdims=True)
    y = (xf - mean) * jax.lax.rsqrt(var + LN_EPS) * gamma.astype(jnp.float32) \
        + beta.astype(jnp.float32)
    z = y @ w.astype(jnp.float32).T + b.astype(jnp.float32)
    return (z + xf).astype(x.dtype)


if __name__ == "__main__":
    root = jax.random.PRNGKey(0)

    def make_params(k, D, dtype):
        kg, kb, kw, kbb = jax.random.split(k, 4)
        gamma = (1.0 + 0.01 * jax.random.normal(kg, (D,))).astype(dtype)
        beta = (0.01 * jax.random.normal(kb, (D,))).astype(dtype)
        wgt = (jax.random.normal(kw, (D, D)) / jnp.sqrt(D)).astype(dtype)   # (out, in)
        bias = (0.01 * jax.random.normal(kbb, (D,))).astype(dtype)
        return gamma, beta, wgt, bias

    # (B, S, D, dtype, wrapper kwargs, atol, rtol).  Tolerances account for TPU
    # default matmul precision and gamma/beta constant folding.
    configs = [
        (2, 8, 128, jnp.float32, {}, 3e-2, 3e-2),                     # resident-weight path
        (2, 9, 128, jnp.float32, {}, 3e-2, 3e-2),                     # ragged row tile (no pad copy)
        (2, 8, 256, jnp.float32, {"col_tile": 128}, 3e-2, 3e-2),      # col-tiled: x_hat + residual cache
        (2, 9, 256, jnp.float32, {"col_tile": 128, "row_tile": 16}, 3e-2, 3e-2),  # col-tiled + ragged rows
        (2, 8, 320, jnp.float32, {"col_tile": 128}, 3e-2, 3e-2),      # padded output-column fallback
        (2, 8, 128, jnp.float32, {"fast_matmul": True}, 5e-2, 5e-2),  # bf16 MXU operands, f32 input
        (4, 128, 128, jnp.bfloat16, {}, 1e-1, 1e-1),                  # bf16, 2 row tiles (megacore)
    ]

    for i, (B, S, D, dtype, kwargs, atol, rtol) in enumerate(configs):
        root, kx, kp = jax.random.split(root, 3)
        x = jax.random.normal(kx, (B, S, D)).astype(dtype)
        gamma, beta, wgt, bias = make_params(kp, D, dtype)

        out = jax.block_until_ready(prenorm_residual(x, gamma, beta, wgt, bias, **kwargs))
        ref = reference(x, gamma, beta, wgt, bias)

        assert out.shape == x.shape and out.dtype == x.dtype
        of, rf = out.astype(jnp.float32), ref.astype(jnp.float32)
        err = float(jnp.max(jnp.abs(of - rf)))
        assert jnp.allclose(of, rf, atol=atol, rtol=rtol), \
            f"config {i} mismatch vs reference (max abs err {err:.3e})"

    print("KERNEL_OK")
</pallas_src>

<mosaic_0001>
module attributes {stable_mosaic.version = 11 : i64} {
  func.func @kernel(%arg0: i32, %arg1: i32, %arg2: memref<16x128xf32, #tpu.memory_space<vmem>>, %arg3: memref<128x128xf32, #tpu.memory_space<vmem>>, %arg4: memref<1x128xf32, #tpu.memory_space<vmem>>, %arg5: memref<16x128xf32, #tpu.memory_space<vmem>>) attributes {dimension_semantics = [#tpu.dimension_semantics<parallel>, #tpu.dimension_semantics<arbitrary>], iteration_bounds = array<i64: 1, 1>, scalar_prefetch = 0 : i64, scratch_operands = 0 : i64, tpu.core_type = #tpu.core_type<tc>, window_params = [{transform_indices = @transform_0, window_bounds = array<i64: 16, 128>}, {transform_indices = @transform_1, window_bounds = array<i64: 128, 128>}, {transform_indices = @transform_2, window_bounds = array<i64: 1, 128>}, {transform_indices = @transform_3, window_bounds = array<i64: 16, 128>}]} {
    %c0 = arith.constant 0 : index
    %c0_0 = arith.constant 0 : index
    %0 = vector.load %arg2[%c0, %c0_0] : memref<16x128xf32, #tpu.memory_space<vmem>>, vector<16x128xf32>
    %cst = arith.constant dense<0.000000e+00> : vector<16xf32>
    %1 = vector.multi_reduction <add>, %0, %cst [1] : vector<16x128xf32> to vector<16xf32>
    %2 = vector.shape_cast %1 : vector<16xf32> to vector<16x1xf32>
    %cst_1 = arith.constant 1.280000e+02 : f32
    %3 = vector.broadcast %cst_1 : f32 to vector<16x1xf32>
    %4 = arith.divf %2, %3 : vector<16x1xf32>
    %5 = vector.broadcast %4 : vector<16x1xf32> to vector<16x128xf32>
    %6 = arith.subf %0, %5 : vector<16x128xf32>
    %7 = arith.mulf %6, %6 : vector<16x128xf32>
    %cst_2 = arith.constant dense<0.000000e+00> : vector<16xf32>
    %8 = vector.multi_reduction <add>, %7, %cst_2 [1] : vector<16x128xf32> to vector<16xf32>
    %9 = vector.shape_cast %8 : vector<16xf32> to vector<16x1xf32>
    %cst_3 = arith.constant 1.280000e+02 : f32
    %10 = vector.broadcast %cst_3 : f32 to vector<16x1xf32>
    %11 = arith.divf %9, %10 : vector<16x1xf32>
    %cst_4 = arith.constant 9.99999974E-6 : f32
    %12 = vector.broadcast %cst_4 : f32 to vector<16x1xf32>
    %13 = arith.addf %11, %12 : vector<16x1xf32>
    %14 = math.rsqrt %13 : vector<16x1xf32>
    %15 = vector.broadcast %14 : vector<16x1xf32> to vector<16x128xf32>
    %16 = arith.mulf %6, %15 : vector<16x128xf32>
    %c0_5 = arith.constant 0 : index
    %c0_6 = arith.constant 0 : index
    %17 = vector.load %arg3[%c0_5, %c0_6] : memref<128x128xf32, #tpu.memory_space<vmem>>, vector<128x128xf32>
    %cst_7 = arith.constant dense<0.000000e+00> : vector<16x128xf32>
    %18 = tpu.matmul %16, %17, %cst_7 {dimension_numbers = #tpu.dot_dimension_numbers<[1], [0], [0], [1], [0, 0, 1, 1], [], []>} : vector<16x128xf32>, vector<128x128xf32>, vector<16x128xf32> -> vector<16x128xf32>
    %c0_8 = arith.constant 0 : index
    %c0_9 = arith.constant 0 : index
    %19 = vector.load %arg4[%c0_8, %c0_9] : memref<1x128xf32, #tpu.memory_space<vmem>>, vector<1x128xf32>
    %20 = vector.broadcast %19 : vector<1x128xf32> to vector<16x128xf32>
    %21 = arith.addf %18, %20 : vector<16x128xf32>
    %22 = arith.addf %21, %0 : vector<16x128xf32>
    %c0_10 = arith.constant 0 : index
    %c0_11 = arith.constant 0 : index
    %23 = vector.load %arg5[%c0_10, %c0_11] : memref<16x128xf32, #tpu.memory_space<vmem>>, vector<16x128xf32>
    tpu.vector_store %arg5[%c0_10, %c0_11], %22 {strides = array<i32>} : memref<16x128xf32, #tpu.memory_space<vmem>>, vector<16x128xf32>,
    return
  }
  func.func @transform_0(%arg0: i32, %arg1: i32) -> (i32, i32) {
    %c0_i32 = arith.constant 0 : i32
    %c0_i32_0 = arith.constant 0 : i32
    return %arg0, %c0_i32 : i32, i32
  }
  func.func @transform_1(%arg0: i32, %arg1: i32) -> (i32, i32) {
    %c0_i32 = arith.constant 0 : i32
    %c0_i32_0 = arith.constant 0 : i32
    return %c0_i32, %arg1 : i32, i32
  }
  func.func @transform_2(%arg0: i32, %arg1: i32) -> (i32, i32) {
    %c0_i32 = arith.constant 0 : i32
    %c0_i32_0 = arith.constant 0 : i32
    return %c0_i32, %arg1 : i32, i32
  }
  func.func @transform_3(%arg0: i32, %arg1: i32) -> (i32, i32) {
    %c0_i32 = arith.constant 0 : i32
    return %arg0, %arg1 : i32, i32
  }
}

</mosaic_0001>

<llo_original>
// kernel: tpu_custom_call.1
$region0: #{tpu_custom_call.1}
  #allocation0 [shape = 'u32[]', space=smem, size = 0x4, offset = 0x4, fixed_abs, tag = 'smem constant byte address 0x4 - core index']
  #allocation1 [shape = 'u32[144,128]{1,0:T(1,128)}', space=vmem, size = 0x12000, scoped, tag = 'internal scratch']
  %s0 = inlined_call_operand.hbm [shape: f32[16,128], index: 0, kind: input, shape index: {}]
  %s1 = inlined_call_operand.hbm [shape: f32[128,128], index: 1, kind: input, shape index: {}]
  %s2 = inlined_call_operand.vmem [shape: f32[1,128], index: 2, kind: input, shape index: {}]
  %s3 = inlined_call_operand.hbm [shape: f32[16,128], index: 3, kind: output, shape index: {}]
  %s4 = sld [smem:[#allocation0]]
  $region30: #{tpu_custom_call.1} parent=0
    _
  %s6 = ssub.s32 1, %s4
  %s7 = scalar_select 0, %s6, %s4
  $region1: #{tpu_custom_call.1} parent=0
    #allocation2 [shape = 'u8[8192]{0}', space=vmem, size = 0x2000, scoped, tag = 'input window, operand 0, single buffered']
    #allocation3 [shape = 's32[1]{0}', space=sflag, size = 0x4, scoped, tag = 'scoped memory for tpu_custom_call.1']
    #allocation4 [shape = 's32[1]{0}', space=sflag, size = 0x4, scoped, tag = 'scoped memory for tpu_custom_call.1']
    #allocation5 [shape = 'u8[65536]{0}', space=vmem, size = 0x10000, scoped, tag = 'input window, operand 1, single buffered']
    #allocation6 [shape = 's32[1]{0}', space=sflag, size = 0x4, scoped, tag = 'scoped memory for tpu_custom_call.1']
    #allocation7 [shape = 'u8[8192]{0}', space=vmem, size = 0x2000, scoped, tag = 'output window, operand 0, single buffered']
    %8 = vsyncpa [#allocation3], 0
    %9 = vsyncpa [#allocation6], 0
    %10 = vsyncpa [#allocation4], 0
    // Predicated region
    $region2: #{tpu_custom_call.1} parent=1 // pred_check
      _
    $region3: #{tpu_custom_call.1} parent=1 // pred_check_branch
      %12 = sbr.rel (0) target = $region5
    $region4: #{tpu_custom_call.1} parent=1 // pred_region
      %s14 = ssub.s32 256, 256
      %15 = vsyncadd [#allocation3], %s14
      %s16 = sshll.u32 [#allocation2], 4
      %s17 = int_to_ptr.vmem [resolvable:$true] %s16
      %22 = dma.hbm_to_vmem [thread:$0]  %s0, 256, %s17, [#allocation3], 128, 128, 8
    $region5: #{tpu_custom_call.1} parent=1 // pred_fallthru
      _
    // Predicated region
    $region6: #{tpu_custom_call.1} parent=1 // pred_check
      _
    $region7: #{tpu_custom_call.1} parent=1 // pred_check_branch
      %24 = sbr.rel (0) target = $region9
    $region8: #{tpu_custom_call.1} parent=1 // pred_region
      %s26 = ssub.s32 2048, 2048
      %27 = vsyncadd [#allocation6], %s26
      %s28 = sshll.u32 [#allocation5], 4
      %s29 = int_to_ptr.vmem [resolvable:$true] %s28
      %34 = dma.hbm_to_vmem [thread:$0]  %s1, 2048, %s29, [#allocation6], 128, 128, 8
    $region9: #{tpu_custom_call.1} parent=1 // pred_fallthru
      _
    // Predicated region
    $region10: #{tpu_custom_call.1} parent=1 // pred_check
      _
    $region11: #{tpu_custom_call.1} parent=1 // pred_check_branch
      %36 = sbr.rel (0) target = $region13
    $region12: #{tpu_custom_call.1} parent=1 // pred_region
      _
    $region13: #{tpu_custom_call.1} parent=1 // pred_fallthru
      _
    // Predicated region
    $region14: #{tpu_custom_call.1} parent=1 // pred_check
      _
    $region15: #{tpu_custom_call.1} parent=1 // pred_check_branch
      %38 = sbr.rel (0) target = $region17
    $region16: #{tpu_custom_call.1} parent=1 // pred_region
      %39 = dma.done [#allocation3], 256
    $region17: #{tpu_custom_call.1} parent=1 // pred_fallthru
      _
    // Predicated region
    $region18: #{tpu_custom_call.1} parent=1 // pred_check
      _
    $region19: #{tpu_custom_call.1} parent=1 // pred_check_branch
      %41 = sbr.rel (0) target = $region21
    $region20: #{tpu_custom_call.1} parent=1 // pred_region
      %42 = dma.done [#allocation6], 2048
    $region21: #{tpu_custom_call.1} parent=1 // pred_fallthru
      _
    %v43 = vld [vmem:[#allocation2] sm:$0xff]
    %v44 = vld [vmem:[#allocation2 + $0x8] sm:$0xff]
    %45 = vadd.xlane.f32.xlu0 %v43
    %v46 = vpop.xlane.xlu0 %45
    %47 = vadd.xlane.f32.xlu0 %v44
    %v48 = vpop.xlane.xlu0 %47
    %v49 = vrcp.pop 128.0
    %v50 = vmul.f32 %v46, %v49
    %v51 = vmul.f32 %v48, %v49
    %v52 = vsub.f32 %v43, %v50
    %v53 = vsub.f32 %v44, %v51
    %v54 = vmul.f32 %v52, %v52
    %v55 = vmul.f32 %v53, %v53
    %56 = vadd.xlane.f32.xlu0 %v54
    %v57 = vpop.xlane.xlu0 %56
    %58 = vadd.xlane.f32.xlu0 %v55
    %v59 = vpop.xlane.xlu0 %58
    %v60 = vmul.f32 %v57, %v49
    %v61 = vmul.f32 %v59, %v49
    %v62 = vadd.f32 %v60, 1e-05
    %v63 = vadd.f32 %v61, 1e-05
    %v64 = vrsqrt.pop %v62
    %v65 = vrsqrt.pop %v63
    %v66 = vmul.f32 %v52, %v64
    %v67 = vmul.f32 %v53, %v65
    %v68 = vld [vmem:[#allocation5] sm:$0xff]
    %v69 = vld [vmem:[#allocation5 + $0x8] sm:$0xff]
    %v70 = vld [vmem:[#allocation5 + $0x10] sm:$0xff]
    %v71 = vld [vmem:[#allocation5 + $0x18] sm:$0xff]
    %v72 = vld [vmem:[#allocation5 + $0x20] sm:$0xff]
    %v73 = vld [vmem:[#allocation5 + $0x28] sm:$0xff]
    %v74 = vld [vmem:[#allocation5 + $0x30] sm:$0xff]
    %v75 = vld [vmem:[#allocation5 + $0x38] sm:$0xff]
    %v76 = vld [vmem:[#allocation5 + $0x40] sm:$0xff]
    %v77 = vld [vmem:[#allocation5 + $0x48] sm:$0xff]
    %v78 = vld [vmem:[#allocation5 + $0x50] sm:$0xff]
    %v79 = vld [vmem:[#allocation5 + $0x58] sm:$0xff]
    %v80 = vld [vmem:[#allocation5 + $0x60] sm:$0xff]
    %v81 = vld [vmem:[#allocation5 + $0x68] sm:$0xff]
    %v82 = vld [vmem:[#allocation5 + $0x70] sm:$0xff]
    %v83 = vld [vmem:[#allocation5 + $0x78] sm:$0xff]
    %v84 = vld [vmem:[%s2] sm:$0x1]
    %v86 = vlaneseq
    %v87 = vshrl.u32 %v86, 7
    %v88 = vsub.s32 0, %v87
    %v89 = vrot.slane %v84, %v88
    %91 = vmatprep.subr.mxu0 0.0
    %92 = vmatpush1.msra.mxu0 %v83
    %93 = vmatprep.subr.mxu0 0.0
    %94 = vmatpush1.msra.mxu0 %v82
    %95 = vmatprep.subr.mxu0 0.0
    %96 = vmatpush1.msra.mxu0 %v81
    %97 = vmatprep.subr.mxu0 0.0
    %98 = vmatpush1.msra.mxu0 %v80
    %99 = vmatprep.subr.mxu0 0.0
    %100 = vmatpush1.msra.mxu0 %v79
    %101 = vmatprep.subr.mxu0 0.0
    %102 = vmatpush1.msra.mxu0 %v78
    %103 = vmatprep.subr.mxu0 0.0
    %104 = vmatpush1.msra.mxu0 %v77
    %105 = vmatprep.subr.mxu0 0.0
    %106 = vmatpush1.msra.mxu0 %v76
    %107 = vmatprep.subr.mxu0 0.0
    %108 = vmatpush1.msra.mxu0 %v75
    %109 = vmatprep.subr.mxu0 0.0
    %110 = vmatpush1.msra.mxu0 %v74
    %111 = vmatprep.subr.mxu0 0.0
    %112 = vmatpush1.msra.mxu0 %v73
    %113 = vmatprep.subr.mxu0 0.0
    %114 = vmatpush1.msra.mxu0 %v72
    %115 = vmatprep.subr.mxu0 0.0
    %116 = vmatpush1.msra.mxu0 %v71
    %117 = vmatprep.subr.mxu0 0.0
    %118 = vmatpush1.msra.mxu0 %v70
    %119 = vmatprep.subr.mxu0 0.0
    %120 = vmatpush1.msra.mxu0 %v69
    %121 = vmatprep.subr.mxu0 0.0
    %122 = vmatpush1.msra.mxu0 %v68
    %123 = vmatprep.subr.mxu0 0.0
    %124 = vmatpush2.msra.mxu0 0.0
    %125 = vmatprep.subr.mxu0 0.0
    %126 = vmatpush2.msra.mxu0 0.0
    %127 = vmatprep.subr.mxu0 0.0
    %128 = vmatpush2.msra.mxu0 0.0
    %129 = vmatprep.subr.mxu0 0.0
    %130 = vmatpush2.msra.mxu0 0.0
    %131 = vmatprep.subr.mxu0 0.0
    %132 = vmatpush2.msra.mxu0 0.0
    %133 = vmatprep.subr.mxu0 0.0
    %134 = vmatpush2.msra.mxu0 0.0
    %135 = vmatprep.subr.mxu0 0.0
    %136 = vmatpush2.msra.mxu0 0.0
    %137 = vmatprep.subr.mxu0 0.0
    %138 = vmatpush2.msra.mxu0 0.0
    %139 = vmatprep.subr.mxu0 0.0
    %140 = vmatpush2.msra.mxu0 0.0
    %141 = vmatprep.subr.mxu0 0.0
    %142 = vmatpush2.msra.mxu0 0.0
    %143 = vmatprep.subr.mxu0 0.0
    %144 = vmatpush2.msra.mxu0 0.0
    %145 = vmatprep.subr.mxu0 0.0
    %146 = vmatpush2.msra.mxu0 0.0
    %147 = vmatprep.subr.mxu0 0.0
    %148 = vmatpush2.msra.mxu0 0.0
    %149 = vmatprep.subr.mxu0 0.0
    %150 = vmatpush2.msra.mxu0 0.0
    %151 = vmatprep.subr.mxu0 0.0
    %152 = vmatpush2.msra.mxu0 0.0
    %153 = vmatprep.subr.mxu0 0.0
    %154 = vmatpush2.msra.mxu0 0.0
    %155 = vmatprep.mubr.f32.mxu0 0.0
    %156 = vmatmul.mubr.f32.gmra.mxu0 %v66
    %v157 = vpop.f32.mrf.mxu0
    %v158 = vadd.f32 %v89, %v157
    %v159 = vpop.f32.mrf.mxu0
    %160 = vmatprep.mubr.f32.mxu0 0.0
    %161 = vmatmul.mubr.f32.gmra.mxu0 %v67
    %v162 = vpop.f32.mrf.mxu0
    %v163 = vadd.f32 %v89, %v162
    %v164 = vpop.f32.mrf.mxu0
    %165 = vdwg.mxu0
    %v166 = vadd.f32 %v158, %v43
    %v167 = vadd.f32 %v163, %v44
    %168 = vst [vmem:[#allocation7] sm:$0xff] %v166
    %169 = vst [vmem:[#allocation7 + $0x8] sm:$0xff] %v167
    // Predicated region
    $region22: #{tpu_custom_call.1} parent=1 // pred_check
      _
    $region23: #{tpu_custom_call.1} parent=1 // pred_check_branch
      %171 = sbr.rel (0) target = $region25
    $region24: #{tpu_custom_call.1} parent=1 // pred_region
      %s173 = ssub.s32 256, 256
      %174 = vsyncadd [#allocation4], %s173
      %s175 = sshll.u32 [#allocation7], 4
      %s176 = int_to_ptr.vmem [resolvable:$true] %s175
      %181 = dma.vmem_to_hbm [thread:$0]  %s176, 256, %s3, [#allocation4], 128, 128, 8
    $region25: #{tpu_custom_call.1} parent=1 // pred_fallthru
      _
    // Predicated region
    $region26: #{tpu_custom_call.1} parent=1 // pred_check
      _
    $region27: #{tpu_custom_call.1} parent=1 // pred_check_branch
      %183 = sbr.rel (0) target = $region29
    $region28: #{tpu_custom_call.1} parent=1 // pred_region
      %184 = dma.done [#allocation4], 256
    $region29: #{tpu_custom_call.1} parent=1 // pred_fallthru
      _
    %185 = vsyncpa [#allocation3], 1
    %186 = vsyncpa [#allocation6], 1
    %187 = vsyncpa [#allocation4], 1

</llo_original>
